<compile_context>
chip_gen: v7x
topology: tpu7x:2x2x1
jax: 0.10.0
libtpu: 0.0.40
codegen_flags: <defaults>
</compile_context>

<pallas_src>
import functools
import math

import jax
import jax.numpy as jnp
from jax.experimental import pallas as pl
from jax.experimental.pallas import tpu as pltpu


def _smooth_label_partial_kernel(logits_ref, labels_ref, out_ref, *,
                                 n_total, tile_n, confidence, smooth_val,
                                 use_kl, needs_mask):
    """logits_ref: (TILE_N, C) VMEM (native dtype), labels_ref: (TILE_N, 1) i32 VMEM,
    out_ref: (8, 128) f32 VMEM per-step partial-sum block (scalar broadcast)."""
    x = logits_ref[...].astype(jnp.float32)                  # (tn, C) f32 compute
    tn, c = x.shape

    # row-wise log-sum-exp (the log_softmax denominator); everything stays f32
    m = jnp.max(x, axis=-1, keepdims=True)
    lse = jnp.log(jnp.sum(jnp.exp(x - m), axis=-1, keepdims=True)) + m   # (tn, 1)

    # x[row, label] via fused compare+select+reduce (cheapest gather-by-iota form)
    col = jax.lax.broadcasted_iota(jnp.int32, (tn, c), 1)
    x_label = jnp.sum(jnp.where(col == labels_ref[...], x, 0.0),
                      axis=-1, keepdims=True)                # (tn, 1)
    picked = x_label - lse                                   # logp at the true label

    if use_kl:
        # sum_j t_ij * logp_ij = (conf - sv)*logp[label] + sv * sum_j logp_ij
        sum_logp = jnp.sum(x, axis=-1, keepdims=True) - c * lse
        contrib = (confidence - smooth_val) * picked + smooth_val * sum_logp
    else:
        contrib = picked

    if needs_mask:
        # Only mask the (tn, 1) contribution column; garbage (even NaN/Inf) in the
        # padded tail rows never leaves its own row and is discarded right here.
        i = pl.program_id(0)
        row = jax.lax.broadcasted_iota(jnp.int32, (tn, 1), 0) + i * tile_n
        contrib = jnp.where(row < n_total, contrib, 0.0)

    # One partial sum per grid step, broadcast over a lane-dense (8,128) block.
    out_ref[...] = jnp.full((8, 128), jnp.sum(contrib), dtype=jnp.float32)


def _choose_tile_n(n, c, itemsize):
    """Pick the row-tile from the *real* VMEM footprint:
       double-buffered native-dtype input (2*itemsize per element) plus ~3 live
       (tile_n, C) f32 temporaries (f32 upcast, exp(x-m), the iota/select chain),
       budgeted at ~20 MiB so total stays well under a 48 MiB scoped VMEM limit
       on every generation (v7x: 64 MiB physical per TC)."""
    budget = 20 * 1024 * 1024
    per_row = c * (2 * itemsize + 3 * 4)
    # sublane packing: 8 rows/vreg for f32, 16 for bf16, 32 for int8/fp8
    align = 8 * max(1, 4 // max(itemsize, 1))
    max_rows = max(budget // max(per_row, 1), align)
    tile = min(n, max_rows, 1024)
    if tile >= n:
        return n
    return max((tile // align) * align, align)


def smooth_label_criterion(dec_outs, labels, label_smoothing=0.0, tile_n=None):
    """Pallas equivalent of SmoothLabelCritierion.forward(dec_outs, labels)."""
    logits = dec_outs[0]                                  # (N, C), native dtype
    gtruth = labels.reshape(-1).astype(jnp.int32)         # (N,)
    n, c = logits.shape

    confidence = 1.0 - float(label_smoothing)
    use_kl = confidence < 1.0
    if use_kl:
        smooth_val = (float(label_smoothing) / (c - 1)) if c > 1 else 0.0
        ent_const = 0.0                                   # per-row sum(t * log t)
        if confidence > 0.0:
            ent_const += confidence * math.log(confidence)
        if c > 1 and smooth_val > 0.0:
            ent_const += (c - 1) * smooth_val * math.log(smooth_val)
    else:
        smooth_val = 0.0
        ent_const = 0.0

    itemsize = jnp.dtype(logits.dtype).itemsize
    if tile_n is None:
        tile_n = _choose_tile_n(n, c, itemsize)
    tile_n = min(tile_n, n)
    grid_n = pl.cdiv(n, tile_n)
    needs_mask = (n % tile_n) != 0

    kernel = functools.partial(
        _smooth_label_partial_kernel,
        n_total=n, tile_n=tile_n, confidence=confidence,
        smooth_val=smooth_val, use_kl=use_kl, needs_mask=needs_mask)

    partials = pl.pallas_call(
        kernel,
        out_shape=jax.ShapeDtypeStruct((grid_n * 8, 128), jnp.float32),
        grid=(grid_n,),
        in_specs=[
            pl.BlockSpec((tile_n, c), lambda i: (i, 0)),   # logits stream (bf16/f32)
            pl.BlockSpec((tile_n, 1), lambda i: (i, 0)),   # labels
        ],
        out_specs=pl.BlockSpec((8, 128), lambda i: (i, 0)),  # per-step partial sum
        compiler_params=pltpu.CompilerParams(
            dimension_semantics=("parallel",),             # independent grid steps
            vmem_limit_bytes=48 * 1024 * 1024),            # safe on v5e/v6e/v7x
    )(logits, gtruth.reshape(n, 1))

    # Finalize in the wrapper: sum the per-tile partials, add the constant, / N.
    total = jnp.sum(partials.reshape(grid_n, 8 * 128)[:, 0])
    if use_kl:
        # KLDivLoss(batchmean): [N*ent_const - sum_i sum_j t*logp] / N
        return jnp.float32(ent_const) - total / n
    else:
        # NLLLoss(mean): -mean_i logp[i, label_i]
        return -total / n


def _reference(dec_outs, labels, label_smoothing):
    """Pure-JAX reference mirroring the PyTorch module semantics."""
    logits = dec_outs[0].astype(jnp.float32)
    gtruth = labels.reshape(-1)
    n, c = logits.shape
    logp = jax.nn.log_softmax(logits, axis=-1)
    confidence = 1.0 - label_smoothing
    if confidence < 1.0:
        smooth_val = label_smoothing / (c - 1)
        target = jnp.full((n, c), smooth_val, jnp.float32)
        target = target.at[jnp.arange(n), gtruth].set(confidence)
        return jnp.sum(target * (jnp.log(target) - logp)) / n
    else:
        return -jnp.mean(logp[jnp.arange(n), gtruth])


if __name__ == "__main__":
    key = jax.random.PRNGKey(0)
    k1, k2, k3, k4 = jax.random.split(key, 4)

    B, N, C = 2, 8, 128            # dec_outs (B, N, C); forward uses dec_outs[0]
    dec_outs = jax.random.normal(k1, (B, N, C), dtype=jnp.float32)
    labels = jax.random.randint(k2, (N,), 0, C, dtype=jnp.int32)

    # label_smoothing > 0 path (KLDivLoss 'batchmean')
    loss_smooth = jax.block_until_ready(
        smooth_label_criterion(dec_outs, labels, label_smoothing=0.1))
    ref_smooth = _reference(dec_outs, labels, 0.1)
    assert jnp.allclose(loss_smooth, ref_smooth, rtol=1e-5, atol=1e-5)

    # label_smoothing == 0 path (NLLLoss 'mean')
    loss_nll = jax.block_until_ready(
        smooth_label_criterion(dec_outs, labels, label_smoothing=0.0))
    ref_nll = _reference(dec_outs, labels, 0.0)
    assert jnp.allclose(loss_nll, ref_nll, rtol=1e-5, atol=1e-5)

    # bf16 logits stream straight into the kernel (no wrapper upcast); f32 compute
    dec_outs_bf16 = dec_outs.astype(jnp.bfloat16)
    loss_bf16 = jax.block_until_ready(
        smooth_label_criterion(dec_outs_bf16, labels, label_smoothing=0.1))
    ref_bf16 = _reference(dec_outs_bf16, labels, 0.1)
    assert jnp.allclose(loss_bf16, ref_bf16, rtol=1e-5, atol=1e-5)

    # multi-tile grid with a ragged last block (n % tile_n != 0): exercises the
    # parallel per-tile partial sums and the padded-row mask on both loss paths.
    N2 = 20
    dec_outs2 = jax.random.normal(k3, (B, N2, C), dtype=jnp.float32)
    labels2 = jax.random.randint(k4, (N2,), 0, C, dtype=jnp.int32)
    for ls in (0.1, 0.0):
        loss_t = jax.block_until_ready(
            smooth_label_criterion(dec_outs2, labels2, label_smoothing=ls, tile_n=8))
        ref_t = _reference(dec_outs2, labels2, ls)
        assert jnp.allclose(loss_t, ref_t, rtol=1e-5, atol=1e-5)

    print("KERNEL_OK")
</pallas_src>

<mosaic_0001>
module attributes {stable_mosaic.version = 11 : i64} {
  func.func @_smooth_label_partial_kernel(%arg0: i32, %arg1: memref<8x128xf32, #tpu.memory_space<vmem>>, %arg2: memref<8x1xi32, #tpu.memory_space<vmem>>, %arg3: memref<8x128xf32, #tpu.memory_space<vmem>>) attributes {dimension_semantics = [#tpu.dimension_semantics<parallel>], iteration_bounds = array<i64: 1>, scalar_prefetch = 0 : i64, scratch_operands = 0 : i64, tpu.core_type = #tpu.core_type<tc>, window_params = [{transform_indices = @transform_0, window_bounds = array<i64: 8, 128>}, {transform_indices = @transform_1, window_bounds = array<i64: 8, 1>}, {transform_indices = @transform_2, window_bounds = array<i64: 8, 128>}]} {
    %c0 = arith.constant 0 : index
    %c0_0 = arith.constant 0 : index
    %0 = vector.load %arg1[%c0, %c0_0] : memref<8x128xf32, #tpu.memory_space<vmem>>, vector<8x128xf32>
    %cst = arith.constant dense<0xFF800000> : vector<8xf32>
    %1 = vector.multi_reduction <maximumf>, %0, %cst [1] : vector<8x128xf32> to vector<8xf32>
    %2 = vector.shape_cast %1 : vector<8xf32> to vector<8x1xf32>
    %3 = vector.broadcast %2 : vector<8x1xf32> to vector<8x128xf32>
    %4 = arith.subf %0, %3 : vector<8x128xf32>
    %5 = math.exp %4 : vector<8x128xf32>
    %cst_1 = arith.constant dense<0.000000e+00> : vector<8xf32>
    %6 = vector.multi_reduction <add>, %5, %cst_1 [1] : vector<8x128xf32> to vector<8xf32>
    %7 = vector.shape_cast %6 : vector<8xf32> to vector<8x1xf32>
    %8 = math.log %7 : vector<8x1xf32>
    %9 = arith.addf %8, %2 : vector<8x1xf32>
    %10 = tpu.iota {dimensions = array<i32: 1>} : vector<8x128xi32>
    %c0_2 = arith.constant 0 : index
    %c0_3 = arith.constant 0 : index
    %11 = vector.load %arg2[%c0_2, %c0_3] : memref<8x1xi32, #tpu.memory_space<vmem>>, vector<8x1xi32>
    %12 = vector.broadcast %11 : vector<8x1xi32> to vector<8x128xi32>
    %13 = arith.cmpi eq, %10, %12 : vector<8x128xi32>
    %cst_4 = arith.constant 0.000000e+00 : f32
    %14 = vector.broadcast %cst_4 : f32 to vector<8x128xf32>
    %15 = arith.select %13, %0, %14 : vector<8x128xi1>, vector<8x128xf32>
    %cst_5 = arith.constant dense<0.000000e+00> : vector<8xf32>
    %16 = vector.multi_reduction <add>, %15, %cst_5 [1] : vector<8x128xf32> to vector<8xf32>
    %17 = vector.shape_cast %16 : vector<8xf32> to vector<8x1xf32>
    %18 = arith.subf %17, %9 : vector<8x1xf32>
    %cst_6 = arith.constant dense<0.000000e+00> : vector<8xf32>
    %19 = vector.multi_reduction <add>, %0, %cst_6 [1] : vector<8x128xf32> to vector<8xf32>
    %20 = vector.shape_cast %19 : vector<8xf32> to vector<8x1xf32>
    %cst_7 = arith.constant 1.280000e+02 : f32
    %21 = vector.broadcast %cst_7 : f32 to vector<8x1xf32>
    %22 = arith.mulf %21, %9 : vector<8x1xf32>
    %23 = arith.subf %20, %22 : vector<8x1xf32>
    %cst_8 = arith.constant 0.899212599 : f32
    %24 = vector.broadcast %cst_8 : f32 to vector<8x1xf32>
    %25 = arith.mulf %24, %18 : vector<8x1xf32>
    %cst_9 = arith.constant 7.87401571E-4 : f32
    %26 = vector.broadcast %cst_9 : f32 to vector<8x1xf32>
    %27 = arith.mulf %26, %23 : vector<8x1xf32>
    %28 = arith.addf %25, %27 : vector<8x1xf32>
    %29 = vector.shape_cast %28 : vector<8x1xf32> to vector<1x8x1xf32>
    %cst_10 = arith.constant dense<0.000000e+00> : vector<1xf32>
    %30 = vector.multi_reduction <add>, %29, %cst_10 [1, 2] : vector<1x8x1xf32> to vector<1xf32>
    %31 = vector.shape_cast %30 : vector<1xf32> to vector<1x1x1xf32>
    %32 = vector.extract %31[0, 0, 0] : f32 from vector<1x1x1xf32>
    %33 = vector.broadcast %32 : f32 to vector<8x128xf32>
    %c0_11 = arith.constant 0 : index
    %c0_12 = arith.constant 0 : index
    %34 = vector.load %arg3[%c0_11, %c0_12] : memref<8x128xf32, #tpu.memory_space<vmem>>, vector<8x128xf32>
    tpu.vector_store %arg3[%c0_11, %c0_12], %33 {strides = array<i32>} : memref<8x128xf32, #tpu.memory_space<vmem>>, vector<8x128xf32>,
    return
  }
  func.func @transform_0(%arg0: i32) -> (i32, i32) {
    %c0_i32 = arith.constant 0 : i32
    %c0_i32_0 = arith.constant 0 : i32
    return %arg0, %c0_i32 : i32, i32
  }
  func.func @transform_1(%arg0: i32) -> (i32, i32) {
    %c0_i32 = arith.constant 0 : i32
    %c0_i32_0 = arith.constant 0 : i32
    return %arg0, %c0_i32 : i32, i32
  }
  func.func @transform_2(%arg0: i32) -> (i32, i32) {
    %c0_i32 = arith.constant 0 : i32
    %c0_i32_0 = arith.constant 0 : i32
    return %arg0, %c0_i32 : i32, i32
  }
}

</mosaic_0001>

<llo_original>
// kernel: tpu_custom_call.1
$region0: #{tpu_custom_call.1}
  #allocation0 [shape = 'u32[]', space=smem, size = 0x4, offset = 0x4, fixed_abs, tag = 'smem constant byte address 0x4 - core index']
  #allocation1 [shape = 'u32[144,128]{1,0:T(1,128)}', space=vmem, size = 0x12000, scoped, tag = 'internal scratch']
  %s0 = inlined_call_operand.vmem [shape: f32[8,128], index: 0, kind: input, shape index: {}]
  %s1 = inlined_call_operand.vmem [shape: s32[8,1], index: 1, kind: input, shape index: {}]
  %s2 = inlined_call_operand.hbm [shape: f32[8,128], index: 2, kind: output, shape index: {}]
  %s3 = sld [smem:[#allocation0]]
  $region18: #{tpu_custom_call.1} parent=0
    _
  %s5 = ssub.s32 1, %s3
  %s6 = scalar_select 0, %s5, %s3
  $region1: #{tpu_custom_call.1} parent=0
    #allocation2 [shape = 'u8[4096]{0}', space=vmem, size = 0x1000, scoped, tag = 'output window, operand 0, single buffered']
    #allocation3 [shape = 's32[1]{0}', space=sflag, size = 0x4, scoped, tag = 'scoped memory for tpu_custom_call.1']
    %7 = vsyncpa [#allocation3], 0
    // Predicated region
    $region2: #{tpu_custom_call.1} parent=1 // pred_check
      _
    $region3: #{tpu_custom_call.1} parent=1 // pred_check_branch
      %9 = sbr.rel (0) target = $region5
    $region4: #{tpu_custom_call.1} parent=1 // pred_region
      _
    $region5: #{tpu_custom_call.1} parent=1 // pred_fallthru
      _
    // Predicated region
    $region6: #{tpu_custom_call.1} parent=1 // pred_check
      _
    $region7: #{tpu_custom_call.1} parent=1 // pred_check_branch
      %11 = sbr.rel (0) target = $region9
    $region8: #{tpu_custom_call.1} parent=1 // pred_region
      _
    $region9: #{tpu_custom_call.1} parent=1 // pred_fallthru
      _
    %v12 = vld [vmem:[%s0] sm:$0xff]
    %13 = vmax.xlane.f32.xlu0 %v12
    %v14 = vpop.xlane.xlu0 %13
    %v15 = vsub.f32 %v12, %v14
    %v16 = vmul.f32 %v15, 1.442695
    %v17 = vpow.pop %v16
    %18 = vadd.xlane.f32.xlu0 %v17
    %v19 = vpop.xlane.xlu0 %18
    %v20 = vlog2.pop %v19
    %v21 = vmul.f32 %v20, 0.6931472
    %v22 = vadd.f32 %v21, %v14
    %v23 = vlaneseq
    %v24 = vand.u32 %v23, 127
    %v25 = vld [vmem:[%s1] sm:$0xff]
    %26 = vset.pattern.permute.xlu0 0
    %27 = vperm.xlu0 %26, %v25
    %v28 = vpop.permute.xlu0 %27
    %vm29 = vcmp.eq.s32.totalorder %v24, %v28
    %v30 = vsel %vm29, %v12, 0.0
    %31 = vadd.xlane.f32.xlu0 %v30
    %v32 = vpop.xlane.xlu0 %31
    %v33 = vsub.f32 %v32, %v22
    %34 = vadd.xlane.f32.xlu0 %v12
    %v35 = vpop.xlane.xlu0 %34
    %v36 = vmul.f32 %v22, 128.0
    %v37 = vsub.f32 %v35, %v36
    %v38 = vmul.f32 %v33, 0.8992126
    %v39 = vmul.f32 %v37, 0.0007874016
    %v40 = vadd.f32 %v38, %v39
    %vm41 = vcmask 7168
    %v42 = vsel %vm41, %v40, 0.0
    %43 = vadd.xlane.f32.xlu0 %v42
    %v44 = vpop.xlane.xlu0 %43
    %v45 = vrot.slane %v44, 4
    %v46 = vadd.f32 %v44, %v45
    %v47 = vrot.slane %v46, 2
    %v48 = vadd.f32 %v46, %v47
    %v49 = vrot.slane %v48, 1
    %v50 = vadd.f32 %v48, %v49
    %s51 = vtos %v50
    %v52 = vstv %s51
    %53 = vst [vmem:[#allocation2] sm:$0xff] %v52
    // Predicated region
    $region10: #{tpu_custom_call.1} parent=1 // pred_check
      _
    $region11: #{tpu_custom_call.1} parent=1 // pred_check_branch
      %55 = sbr.rel (0) target = $region13
    $region12: #{tpu_custom_call.1} parent=1 // pred_region
      %s57 = ssub.s32 128, 128
      %58 = vsyncadd [#allocation3], %s57
      %s60 = sshll.u32 [#allocation2], 4
      %s61 = int_to_ptr.vmem [resolvable:$true] %s60
      %63 = dma.vmem_to_hbm [thread:$0]  %s61, 128, %s2, [#allocation3]
    $region13: #{tpu_custom_call.1} parent=1 // pred_fallthru
      _
    // Predicated region
    $region14: #{tpu_custom_call.1} parent=1 // pred_check
      _
    $region15: #{tpu_custom_call.1} parent=1 // pred_check_branch
      %65 = sbr.rel (0) target = $region17
    $region16: #{tpu_custom_call.1} parent=1 // pred_region
      %66 = dma.done [#allocation3], 128
    $region17: #{tpu_custom_call.1} parent=1 // pred_fallthru
      _
    %67 = vsyncpa [#allocation3], 1

</llo_original>
